<compile_context>
chip_gen: v5e
topology: v5e:2x2
jax: 0.10.0
libtpu: 0.0.40
codegen_flags: <defaults>
</compile_context>

<pallas_src>
import jax
import jax.numpy as jnp
from jax.experimental import pallas as pl
from jax.experimental.pallas import tpu as pltpu


def _round_up(x, m):
    return ((x + m - 1) // m) * m


def _select_tiles(n):
    """Return (n_pad, tm, tk) for the A_hat @ XW stage; n_pad % tm == n_pad % tk == 0."""
    n_pad = _round_up(max(n, 1), 128)
    if n_pad <= 1024:
        tk = n_pad
        # >=2 row tiles whenever possible so both v7x TensorCores get work.
        tm = n_pad if n_pad < 256 else n_pad // 2
    else:
        n_pad = _round_up(n, 512)
        tm = 512
        if n_pad % 2048 == 0:
            tk = 2048
        elif n_pad % 1024 == 0:
            tk = 1024
        else:
            tk = 512
    return n_pad, tm, tk


def _vmem_budget_bytes():
    """Per-generation scoped-VMEM budget (~85% of physical VMEM)."""
    try:
        cap = pltpu.get_tpu_info().vmem_capacity_bytes
    except Exception:
        cap = 64 * 1024 * 1024  # conservative (v7x-sized) fallback
    return int(cap * 0.85)


# ----------------------------- Pallas kernels --------------------------------
def xw_kernel(x_ref, w_ref, o_ref):
    # X @ W on the MXU, f32 accumulation, bf16 result fed to the main kernel.
    o_ref[...] = jnp.dot(
        x_ref[...], w_ref[...], preferred_element_type=jnp.float32
    ).astype(o_ref.dtype)


def _make_ax_kernel_resident(tk):
    """relu(A_hat @ XW + b) with XW fully resident in VMEM (sliced in-kernel)."""

    def kernel(a_ref, xw_ref, b_ref, o_ref):
        k = pl.program_id(1)

        @pl.when(k == 0)
        def _():
            o_ref[...] = jnp.zeros_like(o_ref)

        # Output block index is constant over k -> o_ref stays in VMEM and acts
        # as the f32 accumulator (no scratch, no extra copy).
        off = pl.multiple_of(k * tk, tk)
        o_ref[...] += jnp.dot(
            a_ref[...], xw_ref[pl.ds(off, tk), :],
            preferred_element_type=jnp.float32,
        )

        @pl.when(k == pl.num_programs(1) - 1)
        def _():
            # Epilogue once per output tile: bias + relu, single HBM writeback.
            o_ref[...] = jnp.maximum(o_ref[...] + b_ref[...], 0.0)

    return kernel


def ax_kernel_streamed(a_ref, xw_ref, b_ref, o_ref):
    """Fallback: XW streamed as (tk, H) K-slabs (only for very large graphs)."""
    k = pl.program_id(1)

    @pl.when(k == 0)
    def _():
        o_ref[...] = jnp.zeros_like(o_ref)

    o_ref[...] += jnp.dot(
        a_ref[...], xw_ref[...], preferred_element_type=jnp.float32
    )

    @pl.when(k == pl.num_programs(1) - 1)
    def _():
        o_ref[...] = jnp.maximum(o_ref[...] + b_ref[...], 0.0)


# ------------------------------ wrapper ---------------------------------------
@jax.jit
def gcn_diff_forward(a_p, x, weight, bias):
    """relu(A_hat @ (x @ W) + b).  a_p: padded bf16 normalized adjacency."""
    n, h = x.shape
    n_pad, tm, tk = _select_tiles(n)
    assert a_p.shape == (n_pad, n_pad), (a_p.shape, n_pad)
    h_pad = max(128, _round_up(h, 128))

    vmem_budget = _vmem_budget_bytes()

    # Small (N x H) pads only; the big N^2 matrix arrives pre-padded / pre-cast.
    x_p = jnp.pad(x.astype(jnp.bfloat16), ((0, n_pad - n), (0, h_pad - h)))
    w_p = jnp.pad(weight.astype(jnp.bfloat16), ((0, h_pad - h), (0, h_pad - h)))
    b_p = jnp.pad(bias.astype(jnp.float32).reshape(1, h), ((0, 0), (0, h_pad - h)))

    # ---- Stage 1: XW = X @ W (cheap: 2*N*H^2 flops), tiled over rows --------
    txw = n_pad if n_pad <= 1024 else tk
    xw = pl.pallas_call(
        xw_kernel,
        out_shape=jax.ShapeDtypeStruct((n_pad, h_pad), jnp.bfloat16),
        grid_spec=pltpu.PrefetchScalarGridSpec(
            num_scalar_prefetch=0,
            grid=(n_pad // txw,),
            in_specs=[
                pl.BlockSpec((txw, h_pad), lambda i: (i, 0)),     # X row slab
                pl.BlockSpec((h_pad, h_pad), lambda i: (0, 0)),   # W (resident)
            ],
            out_specs=pl.BlockSpec((txw, h_pad), lambda i: (i, 0)),
        ),
        compiler_params=pltpu.CompilerParams(
            dimension_semantics=("parallel",),
            vmem_limit_bytes=vmem_budget,
        ),
    )(x_p, w_p)

    # ---- Stage 2: relu(A_hat @ XW + b), K-reduction into resident output ----
    row_tiles = n_pad // tm
    k_tiles = n_pad // tk

    xw_bytes = n_pad * h_pad * 2
    a_tile_bytes = tm * tk * 2
    out_tile_bytes = tm * h_pad * 4
    # 2x for double-buffering; 2 MiB headroom for bias + internal scratch.
    resident_need = (2 * xw_bytes + 2 * a_tile_bytes + 2 * out_tile_bytes
                     + 2 * h_pad * 4 + (2 << 20))
    xw_resident = resident_need <= vmem_budget

    if xw_resident:
        ax_kernel = _make_ax_kernel_resident(tk)
        xw_spec = pl.BlockSpec((n_pad, h_pad), lambda i, k: (0, 0))  # resident
        xw_read_bytes = xw_bytes
    else:
        ax_kernel = ax_kernel_streamed
        xw_spec = pl.BlockSpec((tk, h_pad), lambda i, k: (k, 0))     # K-slab
        xw_read_bytes = row_tiles * xw_bytes

    cost = pl.CostEstimate(
        flops=2 * n_pad * n_pad * h_pad,
        transcendentals=0,
        bytes_accessed=(n_pad * n_pad * 2            # A_hat (bf16, once)
                        + xw_read_bytes              # XW (resident or re-streamed)
                        + n_pad * h_pad * 4          # output writeback (f32)
                        + h_pad * 4),                # bias
    )

    out = pl.pallas_call(
        ax_kernel,
        out_shape=jax.ShapeDtypeStruct((n_pad, h_pad), jnp.float32),
        grid_spec=pltpu.PrefetchScalarGridSpec(
            num_scalar_prefetch=0,
            grid=(row_tiles, k_tiles),
            in_specs=[
                pl.BlockSpec((tm, tk), lambda i, k: (i, k)),      # A_hat tile
                xw_spec,                                          # XW
                pl.BlockSpec((1, h_pad), lambda i, k: (0, 0)),    # bias
            ],
            out_specs=pl.BlockSpec((tm, h_pad), lambda i, k: (i, 0)),
        ),
        compiler_params=pltpu.CompilerParams(
            dimension_semantics=("parallel", "arbitrary"),
            vmem_limit_bytes=vmem_budget,
        ),
        cost_estimate=cost,
    )(a_p, xw, b_p)

    return out[:n, :h]


# ------------------------------ JAX glue --------------------------------------
def build_normalized_adjacency_padded(edge_index, edge_weight, num_nodes,
                                      padded_size, out_dtype=jnp.bfloat16):
    """PyG gcn_norm: self loops + symmetric D^{-1/2}(A+I)D^{-1/2}, scattered
    directly into a pre-padded f32 buffer (exact duplicate accumulation) and
    cast once -- no separate jnp.pad pass over N^2 elements."""
    row, col = edge_index[0], edge_index[1]          # source -> target
    if edge_weight is None:
        edge_weight = jnp.ones(row.shape[0], dtype=jnp.float32)
    loop = jnp.arange(num_nodes, dtype=row.dtype)
    row = jnp.concatenate([row, loop])
    col = jnp.concatenate([col, loop])
    w = jnp.concatenate([edge_weight.astype(jnp.float32),
                         jnp.ones(num_nodes, dtype=jnp.float32)])

    deg = jnp.zeros((num_nodes,), jnp.float32).at[col].add(w)
    deg_inv_sqrt = jnp.where(deg > 0, jax.lax.rsqrt(deg), 0.0)
    norm_w = deg_inv_sqrt[row] * w * deg_inv_sqrt[col]

    # dense A_hat: out[i] += norm * x[j] for edge (j=row -> i=col)
    a = jnp.zeros((padded_size, padded_size), jnp.float32).at[col, row].add(norm_w)
    return a.astype(out_dtype)


def init_params(key, hidden):
    """GCNConv params: glorot weight [H, H], zero bias [H] (deterministic)."""
    limit = jnp.sqrt(6.0 / (hidden + hidden))
    w = jax.random.uniform(key, (hidden, hidden), jnp.float32, -limit, limit)
    b = jnp.zeros((hidden,), jnp.float32)
    return w, b


class GCNDiffPallas:
    def __init__(self, use_gdc, in_channels, hidden_channels, key):
        # Reference module builds conv1 = GCNConv(hidden, hidden), so forward
        # expects x with `hidden_channels` features.
        del use_gdc, in_channels
        self.hidden = hidden_channels
        self.weight, self.bias = init_params(key, hidden_channels)
        self.training = False  # eval: F.dropout(p=0.5, training=False) == identity
        # GCNConv(cached=True): normalized adjacency is built once and reused.
        self._cached_a = None
        self._cached_n = None
        # TODO(synk): training-mode dropout (PyTorch-RNG-matched) not implemented;
        # eval-mode forward is exact.

    def __call__(self, x, edge_index, edge_weight=None):
        n = x.shape[0]
        if self._cached_a is None or self._cached_n != n:
            n_pad, _, _ = _select_tiles(n)
            self._cached_a = build_normalized_adjacency_padded(
                edge_index, edge_weight, n, n_pad, jnp.bfloat16)
            self._cached_n = n
        return gcn_diff_forward(self._cached_a, x, self.weight, self.bias)


# ------------------------------- main ------------------------------------------
if __name__ == "__main__":
    key = jax.random.PRNGKey(0)
    k_x, k_e, k_w, k_p = jax.random.split(key, 4)

    num_nodes = 16
    hidden = 32
    num_edges = 40

    x = jax.random.normal(k_x, (num_nodes, hidden), jnp.float32)
    edge_index = jax.random.randint(k_e, (2, num_edges), 0, num_nodes, jnp.int32)
    edge_weight = jax.random.uniform(k_w, (num_edges,), jnp.float32, 0.5, 1.5)

    model = GCNDiffPallas(use_gdc=False, in_channels=hidden,
                          hidden_channels=hidden, key=k_p)

    out = model(x, edge_index, edge_weight)
    out = jax.block_until_ready(out)
    # second call exercises the cached-adjacency path
    out = jax.block_until_ready(model(x, edge_index, edge_weight))

    # reference check in plain JAX (f32); bf16 streams -> looser tolerance
    a_ref = build_normalized_adjacency_padded(edge_index, edge_weight,
                                              num_nodes, num_nodes, jnp.float32)
    ref = jnp.maximum(a_ref @ (x @ model.weight) + model.bias, 0.0)
    assert out.shape == (num_nodes, hidden)
    assert jnp.allclose(out, ref, atol=5e-2, rtol=5e-2), (
        f"max abs diff {jnp.max(jnp.abs(out - ref))}")

    print("KERNEL_OK")
</pallas_src>

<mosaic_0001>
module attributes {stable_mosaic.version = 11 : i64} {
  func.func @xw_kernel(%arg0: i32, %arg1: memref<128x128xbf16, #tpu.memory_space<vmem>>, %arg2: memref<128x128xbf16, #tpu.memory_space<vmem>>, %arg3: memref<128x128xbf16, #tpu.memory_space<vmem>>) attributes {dimension_semantics = [#tpu.dimension_semantics<parallel>], iteration_bounds = array<i64: 1>, scalar_prefetch = 0 : i64, scratch_operands = 0 : i64, tpu.core_type = #tpu.core_type<tc>, window_params = [{transform_indices = @transform_0, window_bounds = array<i64: 128, 128>}, {pipeline_mode = #tpu.pipeline_mode<synchronous>, transform_indices = @transform_1, window_bounds = array<i64: 128, 128>}, {transform_indices = @transform_2, window_bounds = array<i64: 128, 128>}]} {
    %c0 = arith.constant 0 : index
    %c0_0 = arith.constant 0 : index
    %0 = vector.load %arg1[%c0, %c0_0] : memref<128x128xbf16, #tpu.memory_space<vmem>>, vector<128x128xbf16>
    %c0_1 = arith.constant 0 : index
    %c0_2 = arith.constant 0 : index
    %1 = vector.load %arg2[%c0_1, %c0_2] : memref<128x128xbf16, #tpu.memory_space<vmem>>, vector<128x128xbf16>
    %cst = arith.constant dense<0.000000e+00> : vector<128x128xf32>
    %2 = tpu.matmul %0, %1, %cst {dimension_numbers = #tpu.dot_dimension_numbers<[1], [0], [0], [1], [0, 0, 1, 1], [], []>} : vector<128x128xbf16>, vector<128x128xbf16>, vector<128x128xf32> -> vector<128x128xf32>
    %3 = arith.truncf %2 : vector<128x128xf32> to vector<128x128xbf16>
    %c0_3 = arith.constant 0 : index
    %c0_4 = arith.constant 0 : index
    %4 = vector.load %arg3[%c0_3, %c0_4] : memref<128x128xbf16, #tpu.memory_space<vmem>>, vector<128x128xbf16>
    tpu.vector_store %arg3[%c0_3, %c0_4], %3 {strides = array<i32>} : memref<128x128xbf16, #tpu.memory_space<vmem>>, vector<128x128xbf16>,
    return
  }
  func.func @transform_0(%arg0: i32) -> (i32, i32) {
    %c0_i32 = arith.constant 0 : i32
    %c0_i32_0 = arith.constant 0 : i32
    return %arg0, %c0_i32 : i32, i32
  }
  func.func @transform_1(%arg0: i32) -> (i32, i32) {
    %c0_i32 = arith.constant 0 : i32
    %c0_i32_0 = arith.constant 0 : i32
    %c0_i32_1 = arith.constant 0 : i32
    return %c0_i32, %c0_i32_0 : i32, i32
  }
  func.func @transform_2(%arg0: i32) -> (i32, i32) {
    %c0_i32 = arith.constant 0 : i32
    %c0_i32_0 = arith.constant 0 : i32
    return %arg0, %c0_i32 : i32, i32
  }
}

module attributes {stable_mosaic.version = 11 : i64} {
  func.func @kernel(%arg0: i32, %arg1: i32, %arg2: memref<128x128xbf16, #tpu.memory_space<vmem>>, %arg3: memref<128x128xbf16, #tpu.memory_space<vmem>>, %arg4: memref<1x128xf32, #tpu.memory_space<vmem>>, %arg5: memref<128x128xf32, #tpu.memory_space<vmem>>) attributes {dimension_semantics = [#tpu.dimension_semantics<parallel>, #tpu.dimension_semantics<arbitrary>], iteration_bounds = array<i64: 1, 1>, scalar_prefetch = 0 : i64, scratch_operands = 0 : i64, tpu.core_type = #tpu.core_type<tc>, window_params = [{transform_indices = @transform_0, window_bounds = array<i64: 128, 128>}, {pipeline_mode = #tpu.pipeline_mode<synchronous>, transform_indices = @transform_1, window_bounds = array<i64: 128, 128>}, {pipeline_mode = #tpu.pipeline_mode<synchronous>, transform_indices = @transform_2, window_bounds = array<i64: 1, 128>}, {transform_indices = @transform_3, window_bounds = array<i64: 128, 128>}]} {
    %c0_i32 = arith.constant 0 : i32
    %0 = arith.cmpi eq, %arg1, %c0_i32 : i32
    %1 = arith.extui %0 : i1 to i32
    %c0_i32_0 = arith.constant 0 : i32
    %2 = arith.cmpi ne, %1, %c0_i32_0 : i32
    scf.if %2 {
      %cst_9 = arith.constant 0.000000e+00 : f32
      %15 = vector.broadcast %cst_9 : f32 to vector<128x128xf32>
      %c0_10 = arith.constant 0 : index
      %c0_11 = arith.constant 0 : index
      %16 = vector.load %arg5[%c0_10, %c0_11] : memref<128x128xf32, #tpu.memory_space<vmem>>, vector<128x128xf32>
      tpu.vector_store %arg5[%c0_10, %c0_11], %15 {strides = array<i32>} : memref<128x128xf32, #tpu.memory_space<vmem>>, vector<128x128xf32>,
    } else {
    }
    %c128_i32 = arith.constant 128 : i32
    %3 = arith.muli %arg1, %c128_i32 : i32
    %4 = tpu.assume_multiple %3, 128 : i32
    %c0 = arith.constant 0 : index
    %c0_1 = arith.constant 0 : index
    %5 = vector.load %arg5[%c0, %c0_1] : memref<128x128xf32, #tpu.memory_space<vmem>>, vector<128x128xf32>
    %c0_2 = arith.constant 0 : index
    %c0_3 = arith.constant 0 : index
    %6 = vector.load %arg2[%c0_2, %c0_3] : memref<128x128xbf16, #tpu.memory_space<vmem>>, vector<128x128xbf16>
    %7 = arith.index_cast %4 : i32 to index
    %c0_4 = arith.constant 0 : index
    %8 = vector.load %arg3[%7, %c0_4] : memref<128x128xbf16, #tpu.memory_space<vmem>>, vector<128x128xbf16>
    %cst = arith.constant dense<0.000000e+00> : vector<128x128xf32>
    %9 = tpu.matmul %6, %8, %cst {dimension_numbers = #tpu.dot_dimension_numbers<[1], [0], [0], [1], [0, 0, 1, 1], [], []>} : vector<128x128xbf16>, vector<128x128xbf16>, vector<128x128xf32> -> vector<128x128xf32>
    %10 = arith.addf %5, %9 : vector<128x128xf32>
    %c0_5 = arith.constant 0 : index
    %c0_6 = arith.constant 0 : index
    %11 = vector.load %arg5[%c0_5, %c0_6] : memref<128x128xf32, #tpu.memory_space<vmem>>, vector<128x128xf32>
    tpu.vector_store %arg5[%c0_5, %c0_6], %10 {strides = array<i32>} : memref<128x128xf32, #tpu.memory_space<vmem>>, vector<128x128xf32>,
    %c0_i32_7 = arith.constant 0 : i32
    %12 = arith.cmpi eq, %arg1, %c0_i32_7 : i32
    %13 = arith.extui %12 : i1 to i32
    %c0_i32_8 = arith.constant 0 : i32
    %14 = arith.cmpi ne, %13, %c0_i32_8 : i32
    scf.if %14 {
      %c0_9 = arith.constant 0 : index
      %c0_10 = arith.constant 0 : index
      %15 = vector.load %arg5[%c0_9, %c0_10] : memref<128x128xf32, #tpu.memory_space<vmem>>, vector<128x128xf32>
      %c0_11 = arith.constant 0 : index
      %c0_12 = arith.constant 0 : index
      %16 = vector.load %arg4[%c0_11, %c0_12] : memref<1x128xf32, #tpu.memory_space<vmem>>, vector<1x128xf32>
      %17 = vector.broadcast %16 : vector<1x128xf32> to vector<128x128xf32>
      %18 = arith.addf %15, %17 : vector<128x128xf32>
      %cst_13 = arith.constant 0.000000e+00 : f32
      %19 = vector.broadcast %cst_13 : f32 to vector<128x128xf32>
      %20 = arith.maximumf %18, %19 : vector<128x128xf32>
      %c0_14 = arith.constant 0 : index
      %c0_15 = arith.constant 0 : index
      %21 = vector.load %arg5[%c0_14, %c0_15] : memref<128x128xf32, #tpu.memory_space<vmem>>, vector<128x128xf32>
      tpu.vector_store %arg5[%c0_14, %c0_15], %20 {strides = array<i32>} : memref<128x128xf32, #tpu.memory_space<vmem>>, vector<128x128xf32>,
    } else {
    }
    return
  }
  func.func @transform_0(%arg0: i32, %arg1: i32) -> (i32, i32) {
    %c0_i32 = arith.constant 0 : i32
    return %arg0, %arg1 : i32, i32
  }
  func.func @transform_1(%arg0: i32, %arg1: i32) -> (i32, i32) {
    %c0_i32 = arith.constant 0 : i32
    %c0_i32_0 = arith.constant 0 : i32
    %c0_i32_1 = arith.constant 0 : i32
    return %c0_i32, %c0_i32_0 : i32, i32
  }
  func.func @transform_2(%arg0: i32, %arg1: i32) -> (i32, i32) {
    %c0_i32 = arith.constant 0 : i32
    %c0_i32_0 = arith.constant 0 : i32
    %c0_i32_1 = arith.constant 0 : i32
    return %c0_i32, %c0_i32_0 : i32, i32
  }
  func.func @transform_3(%arg0: i32, %arg1: i32) -> (i32, i32) {
    %c0_i32 = arith.constant 0 : i32
    %c0_i32_0 = arith.constant 0 : i32
    return %arg0, %c0_i32 : i32, i32
  }
}

</mosaic_0001>

<llo_original>
// kernel: gcn_diff_forward.2
$region0: #{gcn_diff_forward.2}
  #allocation0 [shape = 'u32[]', space=smem, size = 0x4, offset = 0x4, fixed_abs, tag = 'smem constant byte address 0x4 - core index']
  #allocation1 [shape = 'u32[72,128]{1,0:T(1,128)}', space=vmem, size = 0x9000, scoped, tag = 'internal scratch']
  %s0 = inlined_call_operand.vmem [shape: bf16[128,128], index: 0, kind: input, shape index: {}]
  %s1 = inlined_call_operand.vmem [shape: bf16[128,128], index: 1, kind: input, shape index: {}]
  %s2 = inlined_call_operand.vmem [shape: bf16[128,128], index: 2, kind: output, shape index: {}]
  %s3 = sld [smem:[#allocation0]]
  $region18: #{gcn_diff_forward.2} parent=0
    _
  %s5 = ssub.s32 1, %s3
  %s6 = scalar_select 0, %s5, %s3
  // Predicated region
  $region2: #{gcn_diff_forward.2} parent=0 // pred_check
    _
  $region3: #{gcn_diff_forward.2} parent=0 // pred_check_branch
    %8 = sbr.rel (0) target = $region5
  $region4: #{gcn_diff_forward.2} parent=0 // pred_region
    _
  $region5: #{gcn_diff_forward.2} parent=0 // pred_fallthru
    _
  // Predicated region
  $region6: #{gcn_diff_forward.2} parent=0 // pred_check
    _
  $region7: #{gcn_diff_forward.2} parent=0 // pred_check_branch
    %10 = sbr.rel (0) target = $region9
  $region8: #{gcn_diff_forward.2} parent=0 // pred_region
    _
  $region9: #{gcn_diff_forward.2} parent=0 // pred_fallthru
    _
  %v11 = vld [vmem:[%s0] sm:$0xf]
  %v12 = vld [vmem:[%s0 + $0x4] sm:$0xf]
  %v13 = vld [vmem:[%s0 + $0x8] sm:$0xf]
  %v14 = vld [vmem:[%s0 + $0xc] sm:$0xf]
  %v15 = vld [vmem:[%s0 + $0x10] sm:$0xf]
  %v16 = vld [vmem:[%s0 + $0x14] sm:$0xf]
  %v17 = vld [vmem:[%s0 + $0x18] sm:$0xf]
  %v18 = vld [vmem:[%s0 + $0x1c] sm:$0xf]
  %v19 = vld [vmem:[%s0 + $0x20] sm:$0xf]
  %v20 = vld [vmem:[%s0 + $0x24] sm:$0xf]
  %v21 = vld [vmem:[%s0 + $0x28] sm:$0xf]
  %v22 = vld [vmem:[%s0 + $0x2c] sm:$0xf]
  %v23 = vld [vmem:[%s0 + $0x30] sm:$0xf]
  %v24 = vld [vmem:[%s0 + $0x34] sm:$0xf]
  %v25 = vld [vmem:[%s0 + $0x38] sm:$0xf]
  %v26 = vld [vmem:[%s0 + $0x3c] sm:$0xf]
  %v27 = vld [vmem:[%s1] sm:$0xf]
  %v28 = vld [vmem:[%s1 + $0x4] sm:$0xf]
  %v29 = vld [vmem:[%s1 + $0x8] sm:$0xf]
  %v30 = vld [vmem:[%s1 + $0xc] sm:$0xf]
  %v31 = vld [vmem:[%s1 + $0x10] sm:$0xf]
  %v32 = vld [vmem:[%s1 + $0x14] sm:$0xf]
  %v33 = vld [vmem:[%s1 + $0x18] sm:$0xf]
  %v34 = vld [vmem:[%s1 + $0x1c] sm:$0xf]
  %v35 = vld [vmem:[%s1 + $0x20] sm:$0xf]
  %v36 = vld [vmem:[%s1 + $0x24] sm:$0xf]
  %v37 = vld [vmem:[%s1 + $0x28] sm:$0xf]
  %v38 = vld [vmem:[%s1 + $0x2c] sm:$0xf]
  %v39 = vld [vmem:[%s1 + $0x30] sm:$0xf]
  %v40 = vld [vmem:[%s1 + $0x34] sm:$0xf]
  %v41 = vld [vmem:[%s1 + $0x38] sm:$0xf]
  %v42 = vld [vmem:[%s1 + $0x3c] sm:$0xf]
  %v59 = vunpack.c.l.b16 %v11
  %v60 = vunpack.c.l.b16 %v12
  %v61 = vunpack.c.l.b16 %v13
  %v62 = vunpack.c.l.b16 %v14
  %v63 = vunpack.c.l.b16 %v15
  %v64 = vunpack.c.l.b16 %v16
  %v65 = vunpack.c.l.b16 %v17
  %v66 = vunpack.c.l.b16 %v18
  %v67 = vunpack.c.l.b16 %v19
  %v68 = vunpack.c.l.b16 %v20
  %v69 = vunpack.c.l.b16 %v21
  %v70 = vunpack.c.l.b16 %v22
  %v71 = vunpack.c.l.b16 %v23
  %v72 = vunpack.c.l.b16 %v24
  %v73 = vunpack.c.l.b16 %v25
  %v74 = vunpack.c.l.b16 %v26
  %v75 = vpack.c.b16 %v60, %v59
  %v76 = vpack.c.b16 %v62, %v61
  %v77 = vpack.c.b16 %v64, %v63
  %v78 = vpack.c.b16 %v66, %v65
  %v79 = vpack.c.b16 %v68, %v67
  %v80 = vpack.c.b16 %v70, %v69
  %v81 = vpack.c.b16 %v72, %v71
  %v82 = vpack.c.b16 %v74, %v73
  %v107 = vunpack.c.l.b16 %v27
  %v108 = vunpack.c.l.b16 %v28
  %v109 = vunpack.c.l.b16 %v29
  %v110 = vunpack.c.l.b16 %v30
  %v111 = vunpack.c.l.b16 %v31
  %v112 = vunpack.c.l.b16 %v32
  %v113 = vunpack.c.l.b16 %v33
  %v114 = vunpack.c.l.b16 %v34
  %v115 = vunpack.c.l.b16 %v35
  %v116 = vunpack.c.l.b16 %v36
  %v117 = vunpack.c.l.b16 %v37
  %v118 = vunpack.c.l.b16 %v38
  %v119 = vunpack.c.l.b16 %v39
  %v120 = vunpack.c.l.b16 %v40
  %v121 = vunpack.c.l.b16 %v41
  %v122 = vunpack.c.l.b16 %v42
  %v123 = vpack.c.b16 %v108, %v107
  %v124 = vpack.c.b16 %v110, %v109
  %v125 = vpack.c.b16 %v112, %v111
  %v126 = vpack.c.b16 %v114, %v113
  %v127 = vpack.c.b16 %v116, %v115
  %v128 = vpack.c.b16 %v118, %v117
  %v129 = vpack.c.b16 %v120, %v119
  %v130 = vpack.c.b16 %v122, %v121
  %139 = vmatpush.bf16.msra.mxu0 %v130
  %140 = vmatpush.bf16.msra.mxu0 %v129
  %141 = vmatpush.bf16.msra.mxu0 %v128
  %142 = vmatpush.bf16.msra.mxu0 %v127
  %143 = vmatpush.bf16.msra.mxu0 %v126
  %144 = vmatpush.bf16.msra.mxu0 %v125
  %145 = vmatpush.bf16.msra.mxu0 %v124
  %146 = vmatpush.bf16.msra.mxu0 %v123
  %147 = vmatmul.bf16.gmra.mxu0 %v75
  %v148 = vpop.f32.mrf.mxu0
  %v149 = vadd.f32 0.0, %v148
  %v150 = vpop.f32.mrf.mxu0
  %v151 = vadd.f32 0.0, %v150
  %152 = vmatmul.bf16.gmra.mxu0 %v76
  %v153 = vpop.f32.mrf.mxu0
  %v154 = vadd.f32 0.0, %v153
  %v155 = vpop.f32.mrf.mxu0
  %v156 = vadd.f32 0.0, %v155
  %157 = vmatmul.bf16.gmra.mxu0 %v77
  %v158 = vpop.f32.mrf.mxu0
  %v159 = vadd.f32 0.0, %v158
  %v160 = vpop.f32.mrf.mxu0
  %v161 = vadd.f32 0.0, %v160
  %162 = vmatmul.bf16.gmra.mxu0 %v78
  %v163 = vpop.f32.mrf.mxu0
  %v164 = vadd.f32 0.0, %v163
  %v165 = vpop.f32.mrf.mxu0
  %v166 = vadd.f32 0.0, %v165
  %167 = vmatmul.bf16.gmra.mxu0 %v79
  %v168 = vpop.f32.mrf.mxu0
  %v169 = vadd.f32 0.0, %v168
  %v170 = vpop.f32.mrf.mxu0
  %v171 = vadd.f32 0.0, %v170
  %172 = vmatmul.bf16.gmra.mxu0 %v80
  %v173 = vpop.f32.mrf.mxu0
  %v174 = vadd.f32 0.0, %v173
  %v175 = vpop.f32.mrf.mxu0
  %v176 = vadd.f32 0.0, %v175
  %177 = vmatmul.bf16.gmra.mxu0 %v81
  %v178 = vpop.f32.mrf.mxu0
  %v179 = vadd.f32 0.0, %v178
  %v180 = vpop.f32.mrf.mxu0
  %v181 = vadd.f32 0.0, %v180
  %182 = vmatmul.bf16.gmra.mxu0 %v82
  %v183 = vpop.f32.mrf.mxu0
  %v184 = vadd.f32 0.0, %v183
  %v185 = vpop.f32.mrf.mxu0
  %v186 = vadd.f32 0.0, %v185
  %187 = vdwg.mxu0
  %v188 = vpack.c.bf16 %v149, %v149
  %v189 = vpack.c.bf16 %v151, %v151
  %v190 = vpack.c.bf16 %v154, %v154
  %v191 = vpack.c.bf16 %v156, %v156
  %v192 = vpack.c.bf16 %v159, %v159
  %v193 = vpack.c.bf16 %v161, %v161
  %v194 = vpack.c.bf16 %v164, %v164
  %v195 = vpack.c.bf16 %v166, %v166
  %v196 = vpack.c.bf16 %v169, %v169
  %v197 = vpack.c.bf16 %v171, %v171
  %v198 = vpack.c.bf16 %v174, %v174
  %v199 = vpack.c.bf16 %v176, %v176
  %v200 = vpack.c.bf16 %v179, %v179
  %v201 = vpack.c.bf16 %v181, %v181
  %v202 = vpack.c.bf16 %v184, %v184
  %v203 = vpack.c.bf16 %v186, %v186
  %204 = vst [vmem:[%s2] sm:$0xf] %v188
  %205 = vst [vmem:[%s2 + $0x4] sm:$0xf] %v189
  %206 = vst [vmem:[%s2 + $0x8] sm:$0xf] %v190
  %207 = vst [vmem:[%s2 + $0xc] sm:$0xf] %v191
  %208 = vst [vmem:[%s2 + $0x10] sm:$0xf] %v192
  %209 = vst [vmem:[%s2 + $0x14] sm:$0xf] %v193
  %210 = vst [vmem:[%s2 + $0x18] sm:$0xf] %v194
  %211 = vst [vmem:[%s2 + $0x1c] sm:$0xf] %v195
  %212 = vst [vmem:[%s2 + $0x20] sm:$0xf] %v196
  %213 = vst [vmem:[%s2 + $0x24] sm:$0xf] %v197
  %214 = vst [vmem:[%s2 + $0x28] sm:$0xf] %v198
  %215 = vst [vmem:[%s2 + $0x2c] sm:$0xf] %v199
  %216 = vst [vmem:[%s2 + $0x30] sm:$0xf] %v200
  %217 = vst [vmem:[%s2 + $0x34] sm:$0xf] %v201
  %218 = vst [vmem:[%s2 + $0x38] sm:$0xf] %v202
  %219 = vst [vmem:[%s2 + $0x3c] sm:$0xf] %v203
  // Predicated region
  $region10: #{gcn_diff_forward.2} parent=0 // pred_check
    _
  $region11: #{gcn_diff_forward.2} parent=0 // pred_check_branch
    %221 = sbr.rel (0) target = $region13
  $region12: #{gcn_diff_forward.2} parent=0 // pred_region
    _
  $region13: #{gcn_diff_forward.2} parent=0 // pred_fallthru
    _
  // Predicated region
  $region14: #{gcn_diff_forward.2} parent=0 // pred_check
    _
  $region15: #{gcn_diff_forward.2} parent=0 // pred_check_branch
    %223 = sbr.rel (0) target = $region17
  $region16: #{gcn_diff_forward.2} parent=0 // pred_region
    _
  $region17: #{gcn_diff_forward.2} parent=0 // pred_fallthru
    _

// kernel: gcn_diff_forward.3
$region0: #{gcn_diff_forward.3}
  #allocation0 [shape = 'u32[]', space=smem, size = 0x4, offset = 0x4, fixed_abs, tag = 'smem constant byte address 0x4 - core index']
  #allocation1 [shape = 'u32[72,128]{1,0:T(1,128)}', space=vmem, size = 0x9000, scoped, tag = 'internal scratch']
  %s0 = inlined_call_operand.vmem [shape: bf16[128,128], index: 0, kind: input, shape index: {}]
  %s1 = inlined_call_operand.vmem [shape: bf16[128,128], index: 1, kind: input, shape index: {}]
  %s2 = inlined_call_operand.vmem [shape: f32[1,128], index: 2, kind: input, shape index: {}]
  %s3 = inlined_call_operand.vmem [shape: f32[128,128], index: 3, kind: output, shape index: {}]
  %s4 = sld [smem:[#allocation0]]
  $region30: #{gcn_diff_forward.3} parent=0
    _
  %s6 = ssub.s32 1, %s4
  %s7 = scalar_select 0, %s6, %s4
  // Predicated region
  $region2: #{gcn_diff_forward.3} parent=0 // pred_check
    _
  $region3: #{gcn_diff_forward.3} parent=0 // pred_check_branch
    %9 = sbr.rel (0) target = $region5
  $region4: #{gcn_diff_forward.3} parent=0 // pred_region
    _
  $region5: #{gcn_diff_forward.3} parent=0 // pred_fallthru
    _
  // Predicated region
  $region6: #{gcn_diff_forward.3} parent=0 // pred_check
    _
  $region7: #{gcn_diff_forward.3} parent=0 // pred_check_branch
    %11 = sbr.rel (0) target = $region9
  $region8: #{gcn_diff_forward.3} parent=0 // pred_region
    _
  $region9: #{gcn_diff_forward.3} parent=0 // pred_fallthru
    _
  // Predicated region
  $region10: #{gcn_diff_forward.3} parent=0 // pred_check
    _
  $region11: #{gcn_diff_forward.3} parent=0 // pred_check_branch
    %13 = sbr.rel (0) target = $region13
  $region12: #{gcn_diff_forward.3} parent=0 // pred_region
    _
  $region13: #{gcn_diff_forward.3} parent=0 // pred_fallthru
    _
  %p14 = scmp.eq.s32.totalorder 0, 0
  // Predicated region
  $region14: #{gcn_diff_forward.3} parent=0 // pred_check
    %p15 = pneg %p14
  $region15: #{gcn_diff_forward.3} parent=0 // pred_check_branch
    %17 = sbr.rel (%p15) target = $region17
  $region16: #{gcn_diff_forward.3} parent=0 // pred_region
    %18 = vst [vmem:[%s3] sm:$0xff] 0.0
    %19 = vst [vmem:[%s3 + $0x8] sm:$0xff] 0.0
    %20 = vst [vmem:[%s3 + $0x10] sm:$0xff] 0.0
    %21 = vst [vmem:[%s3 + $0x18] sm:$0xff] 0.0
    %22 = vst [vmem:[%s3 + $0x20] sm:$0xff] 0.0
    %23 = vst [vmem:[%s3 + $0x28] sm:$0xff] 0.0
    %24 = vst [vmem:[%s3 + $0x30] sm:$0xff] 0.0
    %25 = vst [vmem:[%s3 + $0x38] sm:$0xff] 0.0
    %26 = vst [vmem:[%s3 + $0x40] sm:$0xff] 0.0
    %27 = vst [vmem:[%s3 + $0x48] sm:$0xff] 0.0
    %28 = vst [vmem:[%s3 + $0x50] sm:$0xff] 0.0
    %29 = vst [vmem:[%s3 + $0x58] sm:$0xff] 0.0
    %30 = vst [vmem:[%s3 + $0x60] sm:$0xff] 0.0
    %31 = vst [vmem:[%s3 + $0x68] sm:$0xff] 0.0
    %32 = vst [vmem:[%s3 + $0x70] sm:$0xff] 0.0
    %33 = vst [vmem:[%s3 + $0x78] sm:$0xff] 0.0
  $region17: #{gcn_diff_forward.3} parent=0 // pred_fallthru
    _
  %s34 = smul.u32 0, 128
  %v35 = vld [vmem:[%s3] sm:$0xff]
  %v36 = vld [vmem:[%s3 + $0x8] sm:$0xff]
  %v37 = vld [vmem:[%s3 + $0x10] sm:$0xff]
  %v38 = vld [vmem:[%s3 + $0x18] sm:$0xff]
  %v39 = vld [vmem:[%s3 + $0x20] sm:$0xff]
  %v40 = vld [vmem:[%s3 + $0x28] sm:$0xff]
  %v41 = vld [vmem:[%s3 + $0x30] sm:$0xff]
  %v42 = vld [vmem:[%s3 + $0x38] sm:$0xff]
  %v43 = vld [vmem:[%s3 + $0x40] sm:$0xff]
  %v44 = vld [vmem:[%s3 + $0x48] sm:$0xff]
  %v45 = vld [vmem:[%s3 + $0x50] sm:$0xff]
  %v46 = vld [vmem:[%s3 + $0x58] sm:$0xff]
  %v47 = vld [vmem:[%s3 + $0x60] sm:$0xff]
  %v48 = vld [vmem:[%s3 + $0x68] sm:$0xff]
  %v49 = vld [vmem:[%s3 + $0x70] sm:$0xff]
  %v50 = vld [vmem:[%s3 + $0x78] sm:$0xff]
  %v51 = vld [vmem:[%s0] sm:$0xf]
  %v52 = vld [vmem:[%s0 + $0x4] sm:$0xf]
  %v53 = vld [vmem:[%s0 + $0x8] sm:$0xf]
  %v54 = vld [vmem:[%s0 + $0xc] sm:$0xf]
  %v55 = vld [vmem:[%s0 + $0x10] sm:$0xf]
  %v56 = vld [vmem:[%s0 + $0x14] sm:$0xf]
  %v57 = vld [vmem:[%s0 + $0x18] sm:$0xf]
  %v58 = vld [vmem:[%s0 + $0x1c] sm:$0xf]
  %v59 = vld [vmem:[%s0 + $0x20] sm:$0xf]
  %v60 = vld [vmem:[%s0 + $0x24] sm:$0xf]
  %v61 = vld [vmem:[%s0 + $0x28] sm:$0xf]
  %v62 = vld [vmem:[%s0 + $0x2c] sm:$0xf]
  %v63 = vld [vmem:[%s0 + $0x30] sm:$0xf]
  %v64 = vld [vmem:[%s0 + $0x34] sm:$0xf]
  %v65 = vld [vmem:[%s0 + $0x38] sm:$0xf]
  %v66 = vld [vmem:[%s0 + $0x3c] sm:$0xf]
  %s67 = sshra.s32 %s34, 3
  %s68 = sand.u32 %s34, 7
  %s69 = smul.addr %s67, 4
  %s70 = scalar_lea.vmem %s1, %s69
  %v71 = vld [vmem:[%s70] sm:$0xf]
  %v72 = vld [vmem:[%s70 + $0x4] sm:$0xf]
  %v73 = vld [vmem:[%s70 + $0x8] sm:$0xf]
  %v74 = vld [vmem:[%s70 + $0xc] sm:$0xf]
  %v75 = vld [vmem:[%s70 + $0x10] sm:$0xf]
  %v76 = vld [vmem:[%s70 + $0x14] sm:$0xf]
  %v77 = vld [vmem:[%s70 + $0x18] sm:$0xf]
  %v78 = vld [vmem:[%s70 + $0x1c] sm:$0xf]
  %v79 = vld [vmem:[%s70 + $0x20] sm:$0xf]
  %v80 = vld [vmem:[%s70 + $0x24] sm:$0xf]
  %v81 = vld [vmem:[%s70 + $0x28] sm:$0xf]
  %v82 = vld [vmem:[%s70 + $0x2c] sm:$0xf]
  %v83 = vld [vmem:[%s70 + $0x30] sm:$0xf]
  %v84 = vld [vmem:[%s70 + $0x34] sm:$0xf]
  %v85 = vld [vmem:[%s70 + $0x38] sm:$0xf]
  %v86 = vld [vmem:[%s70 + $0x3c] sm:$0xf]
  %v103 = vunpack.c.l.b16 %v51
  %v104 = vunpack.c.l.b16 %v52
  %v105 = vunpack.c.l.b16 %v53
  %v106 = vunpack.c.l.b16 %v54
  %v107 = vunpack.c.l.b16 %v55
  %v108 = vunpack.c.l.b16 %v56
  %v109 = vunpack.c.l.b16 %v57
  %v110 = vunpack.c.l.b16 %v58
  %v111 = vunpack.c.l.b16 %v59
  %v112 = vunpack.c.l.b16 %v60
  %v113 = vunpack.c.l.b16 %v61
  %v114 = vunpack.c.l.b16 %v62
  %v115 = vunpack.c.l.b16 %v63
  %v116 = vunpack.c.l.b16 %v64
  %v117 = vunpack.c.l.b16 %v65
  %v118 = vunpack.c.l.b16 %v66
  %v119 = vpack.c.b16 %v104, %v103
  %v120 = vpack.c.b16 %v106, %v105
  %v121 = vpack.c.b16 %v108, %v107
  %v122 = vpack.c.b16 %v110, %v109
  %v123 = vpack.c.b16 %v112, %v111
  %v124 = vpack.c.b16 %v114, %v113
  %v125 = vpack.c.b16 %v116, %v115
  %v126 = vpack.c.b16 %v118, %v117
  %v151 = vunpack.c.l.b16 %v71
  %v152 = vunpack.c.l.b16 %v72
  %v153 = vunpack.c.l.b16 %v73
  %v154 = vunpack.c.l.b16 %v74
  %v155 = vunpack.c.l.b16 %v75
  %v156 = vunpack.c.l.b16 %v76
  %v157 = vunpack.c.l.b16 %v77
  %v158 = vunpack.c.l.b16 %v78
  %v159 = vunpack.c.l.b16 %v79
  %v160 = vunpack.c.l.b16 %v80
  %v161 = vunpack.c.l.b16 %v81
  %v162 = vunpack.c.l.b16 %v82
  %v163 = vunpack.c.l.b16 %v83
  %v164 = vunpack.c.l.b16 %v84
  %v165 = vunpack.c.l.b16 %v85
  %v166 = vunpack.c.l.b16 %v86
  %v167 = vpack.c.b16 %v152, %v151
  %v168 = vpack.c.b16 %v154, %v153
  %v169 = vpack.c.b16 %v156, %v155
  %v170 = vpack.c.b16 %v158, %v157
  %v171 = vpack.c.b16 %v160, %v159
  %v172 = vpack.c.b16 %v162, %v161
  %v173 = vpack.c.b16 %v164, %v163
  %v174 = vpack.c.b16 %v166, %v165
  %183 = vmatpush.bf16.msra.mxu0 %v174
  %184 = vmatpush.bf16.msra.mxu0 %v173
  %185 = vmatpush.bf16.msra.mxu0 %v172
  %186 = vmatpush.bf16.msra.mxu0 %v171
  %187 = vmatpush.bf16.msra.mxu0 %v170
  %188 = vmatpush.bf16.msra.mxu0 %v169
  %189 = vmatpush.bf16.msra.mxu0 %v168
  %190 = vmatpush.bf16.msra.mxu0 %v167
  %191 = vmatmul.bf16.gmra.mxu0 %v119
  %v192 = vpop.f32.mrf.mxu0
  %v193 = vadd.f32 0.0, %v192
  %v194 = vpop.f32.mrf.mxu0
  %v195 = vadd.f32 0.0, %v194
  %196 = vmatmul.bf16.gmra.mxu0 %v120
  %v197 = vpop.f32.mrf.mxu0
  %v198 = vadd.f32 0.0, %v197
  %v199 = vpop.f32.mrf.mxu0
  %v200 = vadd.f32 0.0, %v199
  %201 = vmatmul.bf16.gmra.mxu0 %v121
  %v202 = vpop.f32.mrf.mxu0
  %v203 = vadd.f32 0.0, %v202
  %v204 = vpop.f32.mrf.mxu0
  %v205 = vadd.f32 0.0, %v204
  %206 = vmatmul.bf16.gmra.mxu0 %v122
  %v207 = vpop.f32.mrf.mxu0
  %v208 = vadd.f32 0.0, %v207
  %v209 = vpop.f32.mrf.mxu0
  %v210 = vadd.f32 0.0, %v209
  %211 = vmatmul.bf16.gmra.mxu0 %v123
  %v212 = vpop.f32.mrf.mxu0
  %v213 = vadd.f32 0.0, %v212
  %v214 = vpop.f32.mrf.mxu0
  %v215 = vadd.f32 0.0, %v214
  %216 = vmatmul.bf16.gmra.mxu0 %v124
  %v217 = vpop.f32.mrf.mxu0
  %v218 = vadd.f32 0.0, %v217
  %v219 = vpop.f32.mrf.mxu0
  %v220 = vadd.f32 0.0, %v219
  %221 = vmatmul.bf16.gmra.mxu0 %v125
  %v222 = vpop.f32.mrf.mxu0
  %v223 = vadd.f32 0.0, %v222
  %v224 = vpop.f32.mrf.mxu0
  %v225 = vadd.f32 0.0, %v224
  %226 = vmatmul.bf16.gmra.mxu0 %v126
  %v227 = vpop.f32.mrf.mxu0
  %v228 = vadd.f32 0.0, %v227
  %v229 = vpop.f32.mrf.mxu0
  %v230 = vadd.f32 0.0, %v229
  %231 = vdwg.mxu0
  %v232 = vadd.f32 %v35, %v193
  %v233 = vadd.f32 %v36, %v195
  %v234 = vadd.f32 %v37, %v198
  %v235 = vadd.f32 %v38, %v200
  %v236 = vadd.f32 %v39, %v203
  %v237 = vadd.f32 %v40, %v205
  %v238 = vadd.f32 %v41, %v208
  %v239 = vadd.f32 %v42, %v210
  %v240 = vadd.f32 %v43, %v213
  %v241 = vadd.f32 %v44, %v215
  %v242 = vadd.f32 %v45, %v218
  %v243 = vadd.f32 %v46, %v220
  %v244 = vadd.f32 %v47, %v223
  %v245 = vadd.f32 %v48, %v225
  %v246 = vadd.f32 %v49, %v228
  %v247 = vadd.f32 %v50, %v230
  %248 = vst [vmem:[%s3] sm:$0xff] %v232
  %249 = vst [vmem:[%s3 + $0x8] sm:$0xff] %v233
  %250 = vst [vmem:[%s3 + $0x10] sm:$0xff] %v234
  %251 = vst [vmem:[%s3 + $0x18] sm:$0xff] %v235
  %252 = vst [vmem:[%s3 + $0x20] sm:$0xff] %v236
  %253 = vst [vmem:[%s3 + $0x28] sm:$0xff] %v237
  %254 = vst [vmem:[%s3 + $0x30] sm:$0xff] %v238
  %255 = vst [vmem:[%s3 + $0x38] sm:$0xff] %v239
  %256 = vst [vmem:[%s3 + $0x40] sm:$0xff] %v240
  %257 = vst [vmem:[%s3 + $0x48] sm:$0xff] %v241
  %258 = vst [vmem:[%s3 + $0x50] sm:$0xff] %v242
  %259 = vst [vmem:[%s3 + $0x58] sm:$0xff] %v243
  %260 = vst [vmem:[%s3 + $0x60] sm:$0xff] %v244
  %261 = vst [vmem:[%s3 + $0x68] sm:$0xff] %v245
  %262 = vst [vmem:[%s3 + $0x70] sm:$0xff] %v246
  %263 = vst [vmem:[%s3 + $0x78] sm:$0xff] %v247
  // Predicated region
  $region18: #{gcn_diff_forward.3} parent=0 // pred_check
    %p264 = pneg %p14
  $region19: #{gcn_diff_forward.3} parent=0 // pred_check_branch
    %266 = sbr.rel (%p264) target = $region21
  $region20: #{gcn_diff_forward.3} parent=0 // pred_region
    %v267 = vld [vmem:[%s3] sm:$0xff]
    %v268 = vld [vmem:[%s3 + $0x8] sm:$0xff]
    %v269 = vld [vmem:[%s3 + $0x10] sm:$0xff]
    %v270 = vld [vmem:[%s3 + $0x18] sm:$0xff]
    %v271 = vld [vmem:[%s3 + $0x20] sm:$0xff]
    %v272 = vld [vmem:[%s3 + $0x28] sm:$0xff]
    %v273 = vld [vmem:[%s3 + $0x30] sm:$0xff]
    %v274 = vld [vmem:[%s3 + $0x38] sm:$0xff]
    %v275 = vld [vmem:[%s3 + $0x40] sm:$0xff]
    %v276 = vld [vmem:[%s3 + $0x48] sm:$0xff]
    %v277 = vld [vmem:[%s3 + $0x50] sm:$0xff]
    %v278 = vld [vmem:[%s3 + $0x58] sm:$0xff]
    %v279 = vld [vmem:[%s3 + $0x60] sm:$0xff]
    %v280 = vld [vmem:[%s3 + $0x68] sm:$0xff]
    %v281 = vld [vmem:[%s3 + $0x70] sm:$0xff]
    %v282 = vld [vmem:[%s3 + $0x78] sm:$0xff]
    %v283 = vld [vmem:[%s2] sm:$0x1]
    %v285 = vperm.slane %v283, 0
    %v287 = vadd.f32 %v267, %v285
    %v288 = vadd.f32 %v268, %v285
    %v289 = vadd.f32 %v269, %v285
    %v290 = vadd.f32 %v270, %v285
    %v291 = vadd.f32 %v271, %v285
    %v292 = vadd.f32 %v272, %v285
    %v293 = vadd.f32 %v273, %v285
    %v294 = vadd.f32 %v274, %v285
    %v295 = vadd.f32 %v275, %v285
    %v296 = vadd.f32 %v276, %v285
    %v297 = vadd.f32 %v277, %v285
    %v298 = vadd.f32 %v278, %v285
    %v299 = vadd.f32 %v279, %v285
    %v300 = vadd.f32 %v280, %v285
    %v301 = vadd.f32 %v281, %v285
    %v302 = vadd.f32 %v282, %v285
    %v303 = vmax.f32 %v287, 0.0
    %v304 = vmax.f32 %v288, 0.0
    %v305 = vmax.f32 %v289, 0.0
    %v306 = vmax.f32 %v290, 0.0
    %v307 = vmax.f32 %v291, 0.0
    %v308 = vmax.f32 %v292, 0.0
    %v309 = vmax.f32 %v293, 0.0
    %v310 = vmax.f32 %v294, 0.0
    %v311 = vmax.f32 %v295, 0.0
    %v312 = vmax.f32 %v296, 0.0
    %v313 = vmax.f32 %v297, 0.0
    %v314 = vmax.f32 %v298, 0.0
    %v315 = vmax.f32 %v299, 0.0
    %v316 = vmax.f32 %v300, 0.0
    %v317 = vmax.f32 %v301, 0.0
    %v318 = vmax.f32 %v302, 0.0
    %319 = vst [vmem:[%s3] sm:$0xff] %v303
    %320 = vst [vmem:[%s3 + $0x8] sm:$0xff] %v304
    %321 = vst [vmem:[%s3 + $0x10] sm:$0xff] %v305
    %322 = vst [vmem:[%s3 + $0x18] sm:$0xff] %v306
    %323 = vst [vmem:[%s3 + $0x20] sm:$0xff] %v307
    %324 = vst [vmem:[%s3 + $0x28] sm:$0xff] %v308
    %325 = vst [vmem:[%s3 + $0x30] sm:$0xff] %v309
    %326 = vst [vmem:[%s3 + $0x38] sm:$0xff] %v310
    %327 = vst [vmem:[%s3 + $0x40] sm:$0xff] %v311
    %328 = vst [vmem:[%s3 + $0x48] sm:$0xff] %v312
    %329 = vst [vmem:[%s3 + $0x50] sm:$0xff] %v313
    %330 = vst [vmem:[%s3 + $0x58] sm:$0xff] %v314
    %331 = vst [vmem:[%s3 + $0x60] sm:$0xff] %v315
    %332 = vst [vmem:[%s3 + $0x68] sm:$0xff] %v316
    %333 = vst [vmem:[%s3 + $0x70] sm:$0xff] %v317
    %334 = vst [vmem:[%s3 + $0x78] sm:$0xff] %v318
  $region21: #{gcn_diff_forward.3} parent=0 // pred_fallthru
    _
  // Predicated region
  $region22: #{gcn_diff_forward.3} parent=0 // pred_check
    _
  $region23: #{gcn_diff_forward.3} parent=0 // pred_check_branch
    %336 = sbr.rel (0) target = $region25
  $region24: #{gcn_diff_forward.3} parent=0 // pred_region
    _
  $region25: #{gcn_diff_forward.3} parent=0 // pred_fallthru
    _
  // Predicated region
  $region26: #{gcn_diff_forward.3} parent=0 // pred_check
    _
  $region27: #{gcn_diff_forward.3} parent=0 // pred_check_branch
    %338 = sbr.rel (0) target = $region29
  $region28: #{gcn_diff_forward.3} parent=0 // pred_region
    _
  $region29: #{gcn_diff_forward.3} parent=0 // pred_fallthru
    _

</llo_original>
